<compile_context>
chip_gen: v6e
topology: v6e:2x2x1
jax: 0.10.0
libtpu: 0.0.40
codegen_flags: <defaults>
</compile_context>

<pallas_src>
import jax
import jax.numpy as jnp
from jax import lax
from jax.experimental import pallas as pl
from jax.experimental.pallas import tpu as pltpu


def _fusion_kernel(img_ref, txt_ref, w_img_ref, w_txt_ref, w1_ref, consts_ref,
                   out_ref):
    """One batch tile of the fused forward pass.

    img_ref   : (TB, image_dim)      f32  VMEM (tiled over batch)
    txt_ref   : (TB, text_dim)       f32  VMEM (tiled over batch)
    w_img_ref : (image_dim, 2H)      bf16 VMEM resident  == [Wi | 0]
    w_txt_ref : (text_dim, 2H)       bf16 VMEM resident  == [0 | Wt]
    w1_ref    : (2H, H)              bf16 VMEM resident  (original fusion_fc1)
    consts_ref: (4, 2H)              f32  VMEM resident
                  row0 = [bi | bt], row1 = [b1 | 0], row2 = [w2 | 0],
                  row3[0] = b2
    out_ref   : (1, TB)              f32  VMEM (lane-dense output row)
    """
    hidden = w1_ref.shape[1]

    # f32 -> bf16 casts happen here (VPU, free slot), not as a wrapper pass.
    img = img_ref[...].astype(jnp.bfloat16)
    txt = txt_ref[...].astype(jnp.bfloat16)

    # Layers "image_fc" + "text_fc" fused into one 2H-wide accumulation:
    #   h = [img | txt] @ [[Wi, 0], [0, Wt]] = img @ [Wi|0] + txt @ [0|Wt]
    h = (jnp.dot(img, w_img_ref[...], preferred_element_type=jnp.float32)
         + jnp.dot(txt, w_txt_ref[...], preferred_element_type=jnp.float32))
    h = jnp.maximum(h + consts_ref[0:1, :], 0.0)                 # + [bi|bt], ReLU

    # fusion_fc1 with the original, un-split (2H, H) weight.
    fused = jnp.dot(h.astype(jnp.bfloat16), w1_ref[...],
                    preferred_element_type=jnp.float32)
    fused = jnp.maximum(fused + consts_ref[1:2, 0:hidden], 0.0)  # + b1, ReLU

    # fusion_fc2 (out_features == 1): trans-B dot_general so the result lands
    # as a lane-dense (1, TB) row (flash-attention-style NT dims, M=1, N=TB).
    w2_row = consts_ref[2:3, 0:hidden]                           # (1, H) f32
    logit = lax.dot_general(w2_row, fused, (((1,), (1,)), ((), ())),
                            preferred_element_type=jnp.float32)  # (1, TB)
    logit = logit + consts_ref[3:4, 0:1]                         # + b2
    out_ref[...] = jax.nn.sigmoid(logit)


def _vmem_capacity_bytes():
    """Physical VMEM of the attached chip (v5e/v6e: 128 MiB, v7x: 64 MiB)."""
    try:
        return int(pltpu.get_tpu_info().vmem_capacity_bytes)
    except Exception:
        return 64 * 2 ** 20  # conservative fallback (v7x-sized)


def _choose_batch_tile(B, act_row_bytes, act_budget_bytes):
    """Largest batch tile whose live per-tile bytes fit the activation budget.

    Keeps >= 2 grid steps once B >= 16 so dimension_semantics=("parallel",)
    can shard the batch across both TensorCores on v7x (no-op on v5e/v6e).
    """
    tb = max(act_budget_bytes // max(act_row_bytes, 1), 8)
    tb = min(tb, 1024)               # >~1K rows: per-step overhead fully amortized
    if B >= 16:
        tb = min(tb, (B + 1) // 2)   # guarantee >= 2 parallel grid steps
    if tb >= B:
        return int(B)                # block == full batch dim (always legal)
    return int(max(8, (tb // 8) * 8))


def multimodal_forward(image, text, params):
    """image: [B, image_dim] f32, text: [B, text_dim] f32 -> sigmoid outputs [B]."""
    (wi, bi, wt, bt, w1, b1, w2, b2) = params
    B, image_dim = image.shape
    text_dim = text.shape[1]
    hidden_dim = wi.shape[1]
    two_h = 2 * hidden_dim

    image = image.astype(jnp.float32)
    text = text.astype(jnp.float32)

    # ---- Weight prep (tiny, reused; wrapper-side by design). ---------------
    # Zero-padded branch weights with a shared 2H-wide output:
    w_img = jnp.zeros((image_dim, two_h), jnp.float32).at[:, :hidden_dim].set(wi)
    w_txt = jnp.zeros((text_dim, two_h), jnp.float32).at[:, hidden_dim:].set(wt)
    w_img = w_img.astype(jnp.bfloat16)
    w_txt = w_txt.astype(jnp.bfloat16)
    w1_bf = w1.astype(jnp.bfloat16)                       # (2H, H), un-split
    # All f32 epilogue constants in one operand (b2 folded in -> no SMEM input).
    consts = jnp.zeros((4, two_h), jnp.float32)
    consts = consts.at[0, :].set(jnp.concatenate([bi, bt]))
    consts = consts.at[1, :hidden_dim].set(b1)
    consts = consts.at[2, :hidden_dim].set(w2.reshape(-1))
    consts = consts.at[3, 0].set(b2.reshape(())[()])

    # ---- VMEM budget / batch tile (generation-aware). ----------------------
    # Per batch row of live bytes while a tile is in flight:
    act_row_bytes = (
        8 * (image_dim + text_dim)    # f32 image+text tiles, double-buffered
        + 2 * (image_dim + text_dim)  # in-kernel bf16 casts
        + 4 * two_h + 2 * two_h       # h f32 + h bf16 recast
        + 4 * hidden_dim              # fused f32
        + 8)                          # f32 output row, double-buffered
    # Resident weights (x2: Pallas double-buffers even constant-index blocks).
    resident_bytes = 2 * ((image_dim * two_h + text_dim * two_h
                           + two_h * hidden_dim) * 2        # bf16 weights
                          + 4 * two_h * 4)                   # f32 consts
    cap = _vmem_capacity_bytes()
    act_budget = max(int(cap * 0.7) - resident_bytes, 2 << 20)
    tb = _choose_batch_tile(B, act_row_bytes, act_budget)
    num_tiles = pl.cdiv(B, tb)

    need = resident_bytes + tb * act_row_bytes + (4 << 20)
    vmem_limit = int(min(cap, max(need, 32 << 20)))

    # ---- Specs. -------------------------------------------------------------
    def act_spec(d):
        return pl.BlockSpec((tb, d), lambda i: (i, 0))

    def res_spec(shape):
        return pl.BlockSpec(shape, lambda i: (0, 0))        # VMEM-resident

    flops = 2 * B * ((image_dim + text_dim) * two_h + two_h * hidden_dim
                     + hidden_dim)
    bytes_accessed = (B * (image_dim + text_dim) * 4 + B * 4
                      + resident_bytes // 2)
    cost = pl.CostEstimate(flops=int(flops), transcendentals=int(B),
                           bytes_accessed=int(bytes_accessed))

    out2d = pl.pallas_call(
        _fusion_kernel,
        out_shape=jax.ShapeDtypeStruct((num_tiles, tb), jnp.float32),
        grid=(num_tiles,),
        in_specs=[
            act_spec(image_dim),                 # image tile (f32)
            act_spec(text_dim),                  # text tile  (f32)
            res_spec((image_dim, two_h)),        # [Wi | 0]   bf16
            res_spec((text_dim, two_h)),         # [0 | Wt]   bf16
            res_spec((two_h, hidden_dim)),       # W1         bf16
            res_spec((4, two_h)),                # [bi|bt ; b1 ; w2 ; b2]  f32
        ],
        out_specs=pl.BlockSpec((1, tb), lambda i: (i, 0)),   # lane-dense rows
        compiler_params=pltpu.CompilerParams(
            dimension_semantics=("parallel",),
            vmem_limit_bytes=vmem_limit),
        cost_estimate=cost,
    )(image, text, w_img, w_txt, w1_bf, consts)

    out = out2d.reshape(-1)[:B]
    # torch .squeeze(): [B, 1] -> [B] for B > 1, 0-d scalar for B == 1.
    return jnp.squeeze(out)


def init_params(key, image_dim, text_dim, hidden_dim):
    """Deterministic PyTorch-style (uniform +-1/sqrt(fan_in)) init."""
    ks = jax.random.split(key, 8)

    def lin(kw, kb, fan_in, fan_out):
        bound = 1.0 / jnp.sqrt(fan_in)
        w = jax.random.uniform(kw, (fan_in, fan_out), jnp.float32, -bound, bound)
        b = jax.random.uniform(kb, (fan_out,), jnp.float32, -bound, bound)
        return w, b

    wi, bi = lin(ks[0], ks[1], image_dim, hidden_dim)        # image_fc
    wt, bt = lin(ks[2], ks[3], text_dim, hidden_dim)         # text_fc
    w1, b1 = lin(ks[4], ks[5], 2 * hidden_dim, hidden_dim)   # fusion_fc1
    w2, b2 = lin(ks[6], ks[7], hidden_dim, 1)                # fusion_fc2
    return (wi, bi, wt, bt, w1, b1, w2, b2)


if __name__ == "__main__":
    # NOTE: at real model sizes, pad hidden_dim to a multiple of 256 (v6e/v7x)
    # or 128 (v5e) for full MXU occupancy; small dims kept to match the spec.
    B, IMAGE_DIM, TEXT_DIM, HIDDEN_DIM = 8, 64, 32, 32

    key = jax.random.PRNGKey(0)
    k_img, k_txt, k_params = jax.random.split(key, 3)

    image = jax.random.normal(k_img, (B, IMAGE_DIM), jnp.float32)
    text = jax.random.normal(k_txt, (B, TEXT_DIM), jnp.float32)
    params = init_params(k_params, IMAGE_DIM, TEXT_DIM, HIDDEN_DIM)

    out = jax.jit(multimodal_forward)(image, text, params)
    out = jax.block_until_ready(out)

    # Pure-JAX f32 reference (kernel uses bf16 matmul operands w/ f32 accum,
    # so agreement is ~1e-2 pre-sigmoid; tolerance below reflects that).
    (wi, bi, wt, bt, w1, b1, w2, b2) = params
    h_i = jax.nn.relu(image @ wi + bi)
    h_t = jax.nn.relu(text @ wt + bt)
    fused = jax.nn.relu(jnp.concatenate([h_i, h_t], axis=1) @ w1 + b1)
    ref = jnp.squeeze(jax.nn.sigmoid(fused @ w2 + b2))

    assert out.shape == (B,), out.shape
    assert bool(jnp.all((out >= 0.0) & (out <= 1.0)))
    err = float(jnp.max(jnp.abs(out - ref)))
    assert err < 5e-2, err
    print("KERNEL_OK")
</pallas_src>

<mosaic_0001>
module attributes {stable_mosaic.version = 11 : i64} {
  func.func @_fusion_kernel(%arg0: i32, %arg1: memref<8x64xf32, #tpu.memory_space<vmem>>, %arg2: memref<8x32xf32, #tpu.memory_space<vmem>>, %arg3: memref<64x64xbf16, #tpu.memory_space<vmem>>, %arg4: memref<32x64xbf16, #tpu.memory_space<vmem>>, %arg5: memref<64x32xbf16, #tpu.memory_space<vmem>>, %arg6: memref<4x64xf32, #tpu.memory_space<vmem>>, %arg7: memref<1x8xf32, #tpu.memory_space<vmem>>) attributes {dimension_semantics = [#tpu.dimension_semantics<parallel>], iteration_bounds = array<i64: 1>, scalar_prefetch = 0 : i64, scratch_operands = 0 : i64, tpu.core_type = #tpu.core_type<tc>, window_params = [{transform_indices = @transform_0, window_bounds = array<i64: 8, 64>}, {transform_indices = @transform_1, window_bounds = array<i64: 8, 32>}, {pipeline_mode = #tpu.pipeline_mode<synchronous>, transform_indices = @transform_2, window_bounds = array<i64: 64, 64>}, {pipeline_mode = #tpu.pipeline_mode<synchronous>, transform_indices = @transform_3, window_bounds = array<i64: 32, 64>}, {pipeline_mode = #tpu.pipeline_mode<synchronous>, transform_indices = @transform_4, window_bounds = array<i64: 64, 32>}, {pipeline_mode = #tpu.pipeline_mode<synchronous>, transform_indices = @transform_5, window_bounds = array<i64: 4, 64>}, {transform_indices = @transform_6, window_bounds = array<i64: 1, 8>}]} {
    %c0 = arith.constant 0 : index
    %c0_0 = arith.constant 0 : index
    %0 = vector.load %arg1[%c0, %c0_0] : memref<8x64xf32, #tpu.memory_space<vmem>>, vector<8x64xf32>
    %1 = arith.truncf %0 : vector<8x64xf32> to vector<8x64xbf16>
    %c0_1 = arith.constant 0 : index
    %c0_2 = arith.constant 0 : index
    %2 = vector.load %arg2[%c0_1, %c0_2] : memref<8x32xf32, #tpu.memory_space<vmem>>, vector<8x32xf32>
    %3 = arith.truncf %2 : vector<8x32xf32> to vector<8x32xbf16>
    %c0_3 = arith.constant 0 : index
    %c0_4 = arith.constant 0 : index
    %4 = vector.load %arg3[%c0_3, %c0_4] : memref<64x64xbf16, #tpu.memory_space<vmem>>, vector<64x64xbf16>
    %cst = arith.constant dense<0.000000e+00> : vector<8x64xf32>
    %5 = tpu.matmul %1, %4, %cst {dimension_numbers = #tpu.dot_dimension_numbers<[1], [0], [0], [1], [0, 0, 1, 1], [], []>} : vector<8x64xbf16>, vector<64x64xbf16>, vector<8x64xf32> -> vector<8x64xf32>
    %c0_5 = arith.constant 0 : index
    %c0_6 = arith.constant 0 : index
    %6 = vector.load %arg4[%c0_5, %c0_6] : memref<32x64xbf16, #tpu.memory_space<vmem>>, vector<32x64xbf16>
    %cst_7 = arith.constant dense<0.000000e+00> : vector<8x64xf32>
    %7 = tpu.matmul %3, %6, %cst_7 {dimension_numbers = #tpu.dot_dimension_numbers<[1], [0], [0], [1], [0, 0, 1, 1], [], []>} : vector<8x32xbf16>, vector<32x64xbf16>, vector<8x64xf32> -> vector<8x64xf32>
    %8 = arith.addf %5, %7 : vector<8x64xf32>
    %c0_8 = arith.constant 0 : index
    %c0_9 = arith.constant 0 : index
    %9 = vector.load %arg6[%c0_8, %c0_9] : memref<4x64xf32, #tpu.memory_space<vmem>>, vector<1x64xf32>
    %10 = vector.broadcast %9 : vector<1x64xf32> to vector<8x64xf32>
    %11 = arith.addf %8, %10 : vector<8x64xf32>
    %cst_10 = arith.constant 0.000000e+00 : f32
    %12 = vector.broadcast %cst_10 : f32 to vector<8x64xf32>
    %13 = arith.maximumf %11, %12 : vector<8x64xf32>
    %14 = arith.truncf %13 : vector<8x64xf32> to vector<8x64xbf16>
    %c0_11 = arith.constant 0 : index
    %c0_12 = arith.constant 0 : index
    %15 = vector.load %arg5[%c0_11, %c0_12] : memref<64x32xbf16, #tpu.memory_space<vmem>>, vector<64x32xbf16>
    %cst_13 = arith.constant dense<0.000000e+00> : vector<8x32xf32>
    %16 = tpu.matmul %14, %15, %cst_13 {dimension_numbers = #tpu.dot_dimension_numbers<[1], [0], [0], [1], [0, 0, 1, 1], [], []>} : vector<8x64xbf16>, vector<64x32xbf16>, vector<8x32xf32> -> vector<8x32xf32>
    %c1 = arith.constant 1 : index
    %c0_14 = arith.constant 0 : index
    %17 = vector.load %arg6[%c1, %c0_14] : memref<4x64xf32, #tpu.memory_space<vmem>>, vector<1x32xf32>
    %18 = vector.broadcast %17 : vector<1x32xf32> to vector<8x32xf32>
    %19 = arith.addf %16, %18 : vector<8x32xf32>
    %cst_15 = arith.constant 0.000000e+00 : f32
    %20 = vector.broadcast %cst_15 : f32 to vector<8x32xf32>
    %21 = arith.maximumf %19, %20 : vector<8x32xf32>
    %c2 = arith.constant 2 : index
    %c0_16 = arith.constant 0 : index
    %22 = vector.load %arg6[%c2, %c0_16] : memref<4x64xf32, #tpu.memory_space<vmem>>, vector<1x32xf32>
    %cst_17 = arith.constant dense<0.000000e+00> : vector<1x8xf32>
    %23 = tpu.matmul %22, %21, %cst_17 {dimension_numbers = #tpu.dot_dimension_numbers<[1], [1], [0], [0], [0, 0, 1, 0], [], []>} : vector<1x32xf32>, vector<8x32xf32>, vector<1x8xf32> -> vector<1x8xf32>
    %c3 = arith.constant 3 : index
    %c0_18 = arith.constant 0 : index
    %24 = vector.load %arg6[%c3, %c0_18] : memref<4x64xf32, #tpu.memory_space<vmem>>, vector<1x1xf32>
    %25 = vector.broadcast %24 : vector<1x1xf32> to vector<1x8xf32>
    %26 = arith.addf %23, %25 : vector<1x8xf32>
    %27 = arith.negf %26 : vector<1x8xf32>
    %28 = math.exp %27 : vector<1x8xf32>
    %cst_19 = arith.constant 1.000000e+00 : f32
    %29 = vector.broadcast %cst_19 : f32 to vector<1x8xf32>
    %30 = arith.addf %29, %28 : vector<1x8xf32>
    %31 = arith.divf %29, %30 : vector<1x8xf32>
    %c0_20 = arith.constant 0 : index
    %c0_21 = arith.constant 0 : index
    %32 = vector.load %arg7[%c0_20, %c0_21] : memref<1x8xf32, #tpu.memory_space<vmem>>, vector<1x8xf32>
    tpu.vector_store %arg7[%c0_20, %c0_21], %31 {strides = array<i32>} : memref<1x8xf32, #tpu.memory_space<vmem>>, vector<1x8xf32>,
    return
  }
  func.func @transform_0(%arg0: i32) -> (i32, i32) {
    %c0_i32 = arith.constant 0 : i32
    %c0_i32_0 = arith.constant 0 : i32
    return %arg0, %c0_i32 : i32, i32
  }
  func.func @transform_1(%arg0: i32) -> (i32, i32) {
    %c0_i32 = arith.constant 0 : i32
    %c0_i32_0 = arith.constant 0 : i32
    return %arg0, %c0_i32 : i32, i32
  }
  func.func @transform_2(%arg0: i32) -> (i32, i32) {
    %c0_i32 = arith.constant 0 : i32
    %c0_i32_0 = arith.constant 0 : i32
    %c0_i32_1 = arith.constant 0 : i32
    return %c0_i32, %c0_i32_0 : i32, i32
  }
  func.func @transform_3(%arg0: i32) -> (i32, i32) {
    %c0_i32 = arith.constant 0 : i32
    %c0_i32_0 = arith.constant 0 : i32
    %c0_i32_1 = arith.constant 0 : i32
    return %c0_i32, %c0_i32_0 : i32, i32
  }
  func.func @transform_4(%arg0: i32) -> (i32, i32) {
    %c0_i32 = arith.constant 0 : i32
    %c0_i32_0 = arith.constant 0 : i32
    %c0_i32_1 = arith.constant 0 : i32
    return %c0_i32, %c0_i32_0 : i32, i32
  }
  func.func @transform_5(%arg0: i32) -> (i32, i32) {
    %c0_i32 = arith.constant 0 : i32
    %c0_i32_0 = arith.constant 0 : i32
    %c0_i32_1 = arith.constant 0 : i32
    return %c0_i32, %c0_i32_0 : i32, i32
  }
  func.func @transform_6(%arg0: i32) -> (i32, i32) {
    %c0_i32 = arith.constant 0 : i32
    %c0_i32_0 = arith.constant 0 : i32
    return %arg0, %c0_i32 : i32, i32
  }
}

</mosaic_0001>

<llo_original>
// kernel: multimodal_forward.1
$region0: #{multimodal_forward.1}
  #allocation0 [shape = 'u32[]', space=smem, size = 0x4, offset = 0x4, fixed_abs, tag = 'smem constant byte address 0x4 - core index']
  #allocation1 [shape = 'u32[144,128]{1,0:T(1,128)}', space=vmem, size = 0x12000, scoped, tag = 'internal scratch']
  %s0 = inlined_call_operand.vmem [shape: f32[8,64], index: 0, kind: input, shape index: {}]
  %s1 = inlined_call_operand.vmem [shape: f32[8,32], index: 1, kind: input, shape index: {}]
  %s2 = inlined_call_operand.vmem [shape: bf16[64,64], index: 2, kind: input, shape index: {}]
  %s3 = inlined_call_operand.vmem [shape: bf16[32,64], index: 3, kind: input, shape index: {}]
  %s4 = inlined_call_operand.vmem [shape: bf16[64,32], index: 4, kind: input, shape index: {}]
  %s5 = inlined_call_operand.vmem [shape: f32[4,64], index: 5, kind: input, shape index: {}]
  %s6 = inlined_call_operand.hbm [shape: f32[1,8], index: 6, kind: output, shape index: {}]
  %s7 = sld [smem:[#allocation0]]
  $region34: #{multimodal_forward.1} parent=0
    _
  %s9 = ssub.s32 1, %s7
  %s10 = scalar_select 0, %s9, %s7
  $region1: #{multimodal_forward.1} parent=0
    #allocation2 [shape = 'u8[512]{0}', space=vmem, size = 0x400, scoped, tag = 'output window, operand 0, single buffered']
    #allocation3 [shape = 's32[1]{0}', space=sflag, size = 0x4, scoped, tag = 'scoped memory for multimodal_forward.1']
    %11 = vsyncpa [#allocation3], 0
    // Predicated region
    $region2: #{multimodal_forward.1} parent=1 // pred_check
      _
    $region3: #{multimodal_forward.1} parent=1 // pred_check_branch
      %13 = sbr.rel (0) target = $region5
    $region4: #{multimodal_forward.1} parent=1 // pred_region
      _
    $region5: #{multimodal_forward.1} parent=1 // pred_fallthru
      _
    // Predicated region
    $region6: #{multimodal_forward.1} parent=1 // pred_check
      _
    $region7: #{multimodal_forward.1} parent=1 // pred_check_branch
      %15 = sbr.rel (0) target = $region9
    $region8: #{multimodal_forward.1} parent=1 // pred_region
      _
    $region9: #{multimodal_forward.1} parent=1 // pred_fallthru
      _
    // Predicated region
    $region10: #{multimodal_forward.1} parent=1 // pred_check
      _
    $region11: #{multimodal_forward.1} parent=1 // pred_check_branch
      %17 = sbr.rel (0) target = $region13
    $region12: #{multimodal_forward.1} parent=1 // pred_region
      _
    $region13: #{multimodal_forward.1} parent=1 // pred_fallthru
      _
    // Predicated region
    $region14: #{multimodal_forward.1} parent=1 // pred_check
      _
    $region15: #{multimodal_forward.1} parent=1 // pred_check_branch
      %19 = sbr.rel (0) target = $region17
    $region16: #{multimodal_forward.1} parent=1 // pred_region
      _
    $region17: #{multimodal_forward.1} parent=1 // pred_fallthru
      _
    // Predicated region
    $region18: #{multimodal_forward.1} parent=1 // pred_check
      _
    $region19: #{multimodal_forward.1} parent=1 // pred_check_branch
      %21 = sbr.rel (0) target = $region21
    $region20: #{multimodal_forward.1} parent=1 // pred_region
      _
    $region21: #{multimodal_forward.1} parent=1 // pred_fallthru
      _
    // Predicated region
    $region22: #{multimodal_forward.1} parent=1 // pred_check
      _
    $region23: #{multimodal_forward.1} parent=1 // pred_check_branch
      %23 = sbr.rel (0) target = $region25
    $region24: #{multimodal_forward.1} parent=1 // pred_region
      _
    $region25: #{multimodal_forward.1} parent=1 // pred_fallthru
      _
    %v25 = vld [vmem:[%s0] sm:$0xff]
    %v26 = vpack.c.bf16 %v25, %v25
    %v27 = vld [vmem:[%s1] sm:$0xff]
    %v28 = vpack.c.bf16 %v27, %v27
    %v29 = vld [vmem:[%s2] sm:$0xf]
    %v30 = vld [vmem:[%s2 + $0x4] sm:$0xf]
    %v31 = vld [vmem:[%s2 + $0x8] sm:$0xf]
    %v32 = vld [vmem:[%s2 + $0xc] sm:$0xf]
    %v33 = vld [vmem:[%s2 + $0x10] sm:$0xf]
    %v34 = vld [vmem:[%s2 + $0x14] sm:$0xf]
    %v35 = vld [vmem:[%s2 + $0x18] sm:$0xf]
    %v36 = vld [vmem:[%s2 + $0x1c] sm:$0xf]
    %v37 = vld [vmem:[%s3] sm:$0xf]
    %v38 = vld [vmem:[%s3 + $0x4] sm:$0xf]
    %v39 = vld [vmem:[%s3 + $0x8] sm:$0xf]
    %v40 = vld [vmem:[%s3 + $0xc] sm:$0xf]
    %v45 = vunpack.c.l.b16 %v37
    %v46 = vunpack.c.l.b16 %v38
    %v47 = vunpack.c.l.b16 %v39
    %v48 = vunpack.c.l.b16 %v40
    %v49 = vpack.c.b16 %v46, %v45
    %v50 = vpack.c.b16 %v48, %v47
    %vm53 = vcmask 261120
    %v55 = vsel %vm53, %v28, 0
    %57 = vmatprep.subr.bf16.mxu0 0
    %58 = vmatpush1.bf16.msra.mxu0 0
    %59 = vmatprep.subr.bf16.mxu0 0
    %60 = vmatpush1.bf16.msra.mxu0 0
    %61 = vmatprep.subr.bf16.mxu0 0
    %62 = vmatpush1.bf16.msra.mxu0 0
    %63 = vmatprep.subr.bf16.mxu0 0
    %64 = vmatpush1.bf16.msra.mxu0 0
    %65 = vmatprep.subr.bf16.mxu0 0
    %66 = vmatpush1.bf16.msra.mxu0 0
    %67 = vmatprep.subr.bf16.mxu0 0
    %68 = vmatpush1.bf16.msra.mxu0 0
    %69 = vmatprep.subr.bf16.mxu0 0
    %70 = vmatpush1.bf16.msra.mxu0 %v50
    %71 = vmatprep.subr.bf16.mxu0 0
    %72 = vmatpush1.bf16.msra.mxu0 %v49
    %73 = vmatprep.subr.bf16.mxu0 0
    %74 = vmatpush2.bf16.msra.mxu0 0
    %75 = vmatprep.subr.bf16.mxu0 0
    %76 = vmatpush2.bf16.msra.mxu0 0
    %77 = vmatprep.subr.bf16.mxu0 0
    %78 = vmatpush2.bf16.msra.mxu0 0
    %79 = vmatprep.subr.bf16.mxu0 0
    %80 = vmatpush2.bf16.msra.mxu0 0
    %81 = vmatprep.subr.bf16.mxu0 0
    %82 = vmatpush2.bf16.msra.mxu0 0
    %83 = vmatprep.subr.bf16.mxu0 0
    %84 = vmatpush2.bf16.msra.mxu0 0
    %85 = vmatprep.subr.bf16.mxu0 0
    %86 = vmatpush2.bf16.msra.mxu0 0
    %87 = vmatprep.subr.bf16.mxu0 0
    %88 = vmatpush2.bf16.msra.mxu0 0
    %89 = vmatprep.mubr.bf16.mxu0 0
    %90 = vmatmul.mubr.bf16.gmra.mxu0 %v55
    %v91 = vpop.f32.mrf.mxu0
    %v92 = vadd.f32 0.0, %v91
    %v93 = vpop.f32.mrf.mxu0
    %v94 = vpop.f32.mrf.mxu0
    %v95 = vpop.f32.mrf.mxu0
    %96 = vdwg.mxu0
    %v105 = vunpack.c.l.b16 %v29
    %v106 = vunpack.c.l.b16 %v30
    %v107 = vunpack.c.l.b16 %v31
    %v108 = vunpack.c.l.b16 %v32
    %v109 = vunpack.c.l.b16 %v33
    %v110 = vunpack.c.l.b16 %v34
    %v111 = vunpack.c.l.b16 %v35
    %v112 = vunpack.c.l.b16 %v36
    %v113 = vpack.c.b16 %v106, %v105
    %v114 = vpack.c.b16 %v108, %v107
    %v115 = vpack.c.b16 %v110, %v109
    %v116 = vpack.c.b16 %v112, %v111
    %vm121 = vcmask 523264
    %v123 = vsel %vm121, %v26, 0
    %125 = vmatprep.subr.bf16.mxu0 0
    %126 = vmatpush1.bf16.msra.mxu0 0
    %127 = vmatprep.subr.bf16.mxu0 0
    %128 = vmatpush1.bf16.msra.mxu0 0
    %129 = vmatprep.subr.bf16.mxu0 0
    %130 = vmatpush1.bf16.msra.mxu0 0
    %131 = vmatprep.subr.bf16.mxu0 0
    %132 = vmatpush1.bf16.msra.mxu0 0
    %133 = vmatprep.subr.bf16.mxu0 0
    %134 = vmatpush1.bf16.msra.mxu0 %v116
    %135 = vmatprep.subr.bf16.mxu0 0
    %136 = vmatpush1.bf16.msra.mxu0 %v115
    %137 = vmatprep.subr.bf16.mxu0 0
    %138 = vmatpush1.bf16.msra.mxu0 %v114
    %139 = vmatprep.subr.bf16.mxu0 0
    %140 = vmatpush1.bf16.msra.mxu0 %v113
    %141 = vmatprep.subr.bf16.mxu0 0
    %142 = vmatpush2.bf16.msra.mxu0 0
    %143 = vmatprep.subr.bf16.mxu0 0
    %144 = vmatpush2.bf16.msra.mxu0 0
    %145 = vmatprep.subr.bf16.mxu0 0
    %146 = vmatpush2.bf16.msra.mxu0 0
    %147 = vmatprep.subr.bf16.mxu0 0
    %148 = vmatpush2.bf16.msra.mxu0 0
    %149 = vmatprep.subr.bf16.mxu0 0
    %150 = vmatpush2.bf16.msra.mxu0 0
    %151 = vmatprep.subr.bf16.mxu0 0
    %152 = vmatpush2.bf16.msra.mxu0 0
    %153 = vmatprep.subr.bf16.mxu0 0
    %154 = vmatpush2.bf16.msra.mxu0 0
    %155 = vmatprep.subr.bf16.mxu0 0
    %156 = vmatpush2.bf16.msra.mxu0 0
    %157 = vmatprep.mubr.bf16.mxu0 0
    %158 = vmatmul.mubr.bf16.gmra.mxu0 %v123
    %v159 = vpop.f32.mrf.mxu0
    %v160 = vadd.f32 %v92, %v159
    %v161 = vpop.f32.mrf.mxu0
    %v162 = vpop.f32.mrf.mxu0
    %v163 = vpop.f32.mrf.mxu0
    %164 = vdwg.mxu0
    %v165 = vld [vmem:[%s5] sm:$0x1]
    %v166 = vlaneseq
    %v167 = vshrl.u32 %v166, 7
    %v168 = vsub.s32 0, %v167
    %v169 = vrot.slane %v165, %v168
    %v170 = vadd.f32 %v160, %v169
    %v171 = vmax.f32 %v170, 0.0
    %v172 = vpack.c.bf16 %v171, %v171
    %v173 = vld [vmem:[%s4] sm:$0xf]
    %v174 = vld [vmem:[%s4 + $0x4] sm:$0xf]
    %v175 = vld [vmem:[%s4 + $0x8] sm:$0xf]
    %v176 = vld [vmem:[%s4 + $0xc] sm:$0xf]
    %v177 = vld [vmem:[%s4 + $0x10] sm:$0xf]
    %v178 = vld [vmem:[%s4 + $0x14] sm:$0xf]
    %v179 = vld [vmem:[%s4 + $0x18] sm:$0xf]
    %v180 = vld [vmem:[%s4 + $0x1c] sm:$0xf]
    %v181 = vld [vmem:[%s5 + $0x1] sm:$0x1]
    %v182 = vlaneseq
    %v183 = vshrl.u32 %v182, 7
    %v184 = vsub.s32 0, %v183
    %v185 = vrot.slane %v181, %v184
    %v194 = vunpack.c.l.b16 %v173
    %v195 = vunpack.c.l.b16 %v174
    %v196 = vunpack.c.l.b16 %v175
    %v197 = vunpack.c.l.b16 %v176
    %v198 = vunpack.c.l.b16 %v177
    %v199 = vunpack.c.l.b16 %v178
    %v200 = vunpack.c.l.b16 %v179
    %v201 = vunpack.c.l.b16 %v180
    %v202 = vpack.c.b16 %v195, %v194
    %v203 = vpack.c.b16 %v197, %v196
    %v204 = vpack.c.b16 %v199, %v198
    %v205 = vpack.c.b16 %v201, %v200
    %v211 = vsel %vm121, %v172, 0
    %213 = vmatprep.subr.bf16.mxu0 0
    %214 = vmatpush1.bf16.msra.mxu0 0
    %215 = vmatprep.subr.bf16.mxu0 0
    %216 = vmatpush1.bf16.msra.mxu0 0
    %217 = vmatprep.subr.bf16.mxu0 0
    %218 = vmatpush1.bf16.msra.mxu0 0
    %219 = vmatprep.subr.bf16.mxu0 0
    %220 = vmatpush1.bf16.msra.mxu0 0
    %221 = vmatprep.subr.bf16.mxu0 0
    %222 = vmatpush1.bf16.msra.mxu0 %v205
    %223 = vmatprep.subr.bf16.mxu0 0
    %224 = vmatpush1.bf16.msra.mxu0 %v204
    %225 = vmatprep.subr.bf16.mxu0 0
    %226 = vmatpush1.bf16.msra.mxu0 %v203
    %227 = vmatprep.subr.bf16.mxu0 0
    %228 = vmatpush1.bf16.msra.mxu0 %v202
    %229 = vmatprep.subr.bf16.mxu0 0
    %230 = vmatpush2.bf16.msra.mxu0 0
    %231 = vmatprep.subr.bf16.mxu0 0
    %232 = vmatpush2.bf16.msra.mxu0 0
    %233 = vmatprep.subr.bf16.mxu0 0
    %234 = vmatpush2.bf16.msra.mxu0 0
    %235 = vmatprep.subr.bf16.mxu0 0
    %236 = vmatpush2.bf16.msra.mxu0 0
    %237 = vmatprep.subr.bf16.mxu0 0
    %238 = vmatpush2.bf16.msra.mxu0 0
    %239 = vmatprep.subr.bf16.mxu0 0
    %240 = vmatpush2.bf16.msra.mxu0 0
    %241 = vmatprep.subr.bf16.mxu0 0
    %242 = vmatpush2.bf16.msra.mxu0 0
    %243 = vmatprep.subr.bf16.mxu0 0
    %244 = vmatpush2.bf16.msra.mxu0 0
    %245 = vmatprep.mubr.bf16.mxu0 0
    %246 = vmatmul.mubr.bf16.gmra.mxu0 %v211
    %v247 = vpop.f32.mrf.mxu0
    %v248 = vadd.f32 %v185, %v247
    %v249 = vpop.f32.mrf.mxu0
    %v250 = vpop.f32.mrf.mxu0
    %v251 = vpop.f32.mrf.mxu0
    %252 = vdwg.mxu0
    %v253 = vmax.f32 %v248, 0.0
    %v254 = vld [vmem:[%s5 + $0x2] sm:$0x1]
    %v255 = vld [vmem:[%s5 + $0x3] sm:$0x1]
    %257 = vset.pattern.permute.xlu0 0
    %258 = vperm.xlu0 %257, %v255
    %v259 = vpop.permute.xlu0 %258
    %v262 = vsel %vm53, %v254, 0
    %v265 = vsel %vm53, %v253, 0
    %267 = vmatprep.subr.mxu0 0.0
    %268 = vmatpush1.xpose.msra.mxu0 0.0
    %269 = vmatprep.subr.mxu0 0.0
    %270 = vmatpush1.xpose.msra.mxu0 0.0
    %271 = vmatprep.subr.mxu0 0.0
    %272 = vmatpush1.xpose.msra.mxu0 0.0
    %273 = vmatprep.subr.mxu0 0.0
    %274 = vmatpush1.xpose.msra.mxu0 0.0
    %275 = vmatprep.subr.mxu0 0.0
    %276 = vmatpush1.xpose.msra.mxu0 0.0
    %277 = vmatprep.subr.mxu0 0.0
    %278 = vmatpush1.xpose.msra.mxu0 0.0
    %279 = vmatprep.subr.mxu0 0.0
    %280 = vmatpush1.xpose.msra.mxu0 0.0
    %281 = vmatprep.subr.mxu0 0.0
    %282 = vmatpush1.xpose.msra.mxu0 0.0
    %283 = vmatprep.subr.mxu0 0.0
    %284 = vmatpush1.xpose.msra.mxu0 0.0
    %285 = vmatprep.subr.mxu0 0.0
    %286 = vmatpush1.xpose.msra.mxu0 0.0
    %287 = vmatprep.subr.mxu0 0.0
    %288 = vmatpush1.xpose.msra.mxu0 0.0
    %289 = vmatprep.subr.mxu0 0.0
    %290 = vmatpush1.xpose.msra.mxu0 0.0
    %291 = vmatprep.subr.mxu0 0.0
    %292 = vmatpush1.xpose.msra.mxu0 0.0
    %293 = vmatprep.subr.mxu0 0.0
    %294 = vmatpush1.xpose.msra.mxu0 0.0
    %295 = vmatprep.subr.mxu0 0.0
    %296 = vmatpush1.xpose.msra.mxu0 0.0
    %297 = vmatprep.subr.mxu0 0.0
    %298 = vmatpush1.xpose.msra.mxu0 %v265
    %299 = vmatprep.subr.mxu0 0.0
    %300 = vmatpush2.xpose.msra.mxu0 0.0
    %301 = vmatprep.subr.mxu0 0.0
    %302 = vmatpush2.xpose.msra.mxu0 0.0
    %303 = vmatprep.subr.mxu0 0.0
    %304 = vmatpush2.xpose.msra.mxu0 0.0
    %305 = vmatprep.subr.mxu0 0.0
    %306 = vmatpush2.xpose.msra.mxu0 0.0
    %307 = vmatprep.subr.mxu0 0.0
    %308 = vmatpush2.xpose.msra.mxu0 0.0
    %309 = vmatprep.subr.mxu0 0.0
    %310 = vmatpush2.xpose.msra.mxu0 0.0
    %311 = vmatprep.subr.mxu0 0.0
    %312 = vmatpush2.xpose.msra.mxu0 0.0
    %313 = vmatprep.subr.mxu0 0.0
    %314 = vmatpush2.xpose.msra.mxu0 0.0
    %315 = vmatprep.subr.mxu0 0.0
    %316 = vmatpush2.xpose.msra.mxu0 0.0
    %317 = vmatprep.subr.mxu0 0.0
    %318 = vmatpush2.xpose.msra.mxu0 0.0
    %319 = vmatprep.subr.mxu0 0.0
    %320 = vmatpush2.xpose.msra.mxu0 0.0
    %321 = vmatprep.subr.mxu0 0.0
    %322 = vmatpush2.xpose.msra.mxu0 0.0
    %323 = vmatprep.subr.mxu0 0.0
    %324 = vmatpush2.xpose.msra.mxu0 0.0
    %325 = vmatprep.subr.mxu0 0.0
    %326 = vmatpush2.xpose.msra.mxu0 0.0
    %327 = vmatprep.subr.mxu0 0.0
    %328 = vmatpush2.xpose.msra.mxu0 0.0
    %329 = vmatprep.subr.mxu0 0.0
    %330 = vmatpush2.xpose.msra.mxu0 0.0
    %331 = vmatprep.mubr.f32.mxu0 0.0
    %332 = vmatmul.mubr.f32.gmra.mxu0 %v262
    %v333 = vpop.f32.mrf.mxu0
    %v334 = vadd.f32 %v259, %v333
    %v335 = vpop.f32.mrf.mxu0
    %336 = vdwg.mxu0
    %v337 = vxor.u32 %v334, 2147483648
    %v338 = vmul.f32 %v337, 1.442695
    %v339 = vpow.pop %v338
    %v340 = vadd.f32 %v339, 1.0
    %v341 = vrcp.pop %v340
    %v342 = vmul.f32 1.0, %v341
    %vm343 = vcmask 57344
    %344 = vst.msk [vmem:[#allocation2] sm:$0x1] %vm343, %v342
    // Predicated region
    $region26: #{multimodal_forward.1} parent=1 // pred_check
      _
    $region27: #{multimodal_forward.1} parent=1 // pred_check_branch
      %346 = sbr.rel (0) target = $region29
    $region28: #{multimodal_forward.1} parent=1 // pred_region
      %s348 = ssub.s32 16, 16
      %349 = vsyncadd [#allocation3], %s348
      %s351 = sshll.u32 [#allocation2], 4
      %s352 = int_to_ptr.vmem [resolvable:$true] %s351
      %354 = dma.vmem_to_hbm [thread:$0]  %s352, 16, %s6, [#allocation3]
    $region29: #{multimodal_forward.1} parent=1 // pred_fallthru
      _
    // Predicated region
    $region30: #{multimodal_forward.1} parent=1 // pred_check
      _
    $region31: #{multimodal_forward.1} parent=1 // pred_check_branch
      %356 = sbr.rel (0) target = $region33
    $region32: #{multimodal_forward.1} parent=1 // pred_region
      %357 = dma.done [#allocation3], 16
    $region33: #{multimodal_forward.1} parent=1 // pred_fallthru
      _
    %358 = vsyncpa [#allocation3], 1

</llo_original>
